<compile_context>
chip_gen: v5e
topology: v5e:2x2
jax: 0.10.0
libtpu: 0.0.40
codegen_flags: <defaults>
</compile_context>

<pallas_src>
import functools
import numpy as np
import jax
import jax.numpy as jnp
from jax.experimental import pallas as pl
from jax.experimental.pallas import tpu as pltpu

NEG_SLOPE = 0.15
EPS = 1e-5


# ----------------------------------------------------------------------------- glue
def _conv_pool_matrix(w, b, win, stride, pool):
    """Fold Conv2d(kernel=(1,K), stride=(1,stride)) followed by
    AvgPool2d((1,pool), (1,pool)) into a dense (Cin*win, Cout*wp) matrix plus an
    expanded bias.  Pure-numpy parameter setup (no FLOPs on the data path)."""
    w = np.asarray(w, dtype=np.float64)          # (Cout, Cin, K)
    b = np.asarray(b, dtype=np.float64)          # (Cout,)
    cout, cin, K = w.shape
    wc = (win - K) // stride + 1                 # conv output width
    wp = (wc - pool) // pool + 1                 # pooled output width
    A = np.zeros((cin, win, cout, wp), dtype=np.float64)
    wt = np.transpose(w, (1, 2, 0)) / pool       # (Cin, K, Cout)
    for u in range(wp):
        for r in range(pool):
            s = (u * pool + r) * stride
            A[:, s:s + K, :, u] += wt
    A = A.reshape(cin * win, cout * wp).astype(np.float32)
    b_e = np.repeat(b, wp).astype(np.float32)    # column index = co*wp + u
    return A, b_e, wp


def _round_up(v, m):
    return (v + m - 1) // m * m


def _choose_row_tile(m, cap=1024):
    """Row-tile selection: multiple of 8 (16-aligned when multi-tile, for bf16 sublane
    packing), as large as possible up to `cap` (amortizes ~0.35 us/grid-step and keeps
    DMA bursts long), preferring an exact divisor of M (no row padding) and >= 2 grid
    steps when M is large enough (v7x dual-TensorCore sharding of the parallel axis).
    Working set at TM=1024 is only ~5 MiB double-buffered — VMEM is never the limit."""
    m8 = _round_up(m, 8)
    if m8 <= cap:
        if m8 >= 512 and m8 % 32 == 0:
            return m8 // 2                       # two grid steps for dual-TC
        return m8                                # single full-dim tile (always legal)
    for t in range(cap, 255, -16):               # prefer an exact divisor: no padding
        if m8 % t == 0:
            return t
    return cap                                   # no good divisor -> pad rows + mask


# -------------------------------------------------------------------------- kernel
def _stage_kernel(x_ref, a13_ref, b13_ref, a2_ref, b2_ref, slope_ref,
                  h_ref, st_ref, *, tm, m_valid, mask_rows):
    """Fused conv GEMMs + activations + per-tile BN partial statistics (single pass)."""
    # stage 1: conv_1_1 and conv_2_1 fused into one Toeplitz GEMM (bf16 MXU, f32 acc);
    # x arrives as f32 and is cast here (no wrapper-side pad/cast pre-pass).
    xb = x_ref[...].astype(jnp.bfloat16)
    z1 = jnp.dot(xb, a13_ref[...], preferred_element_type=jnp.float32)
    z1 = z1 + b13_ref[...]
    h13 = jnp.where(z1 > 0, z1, NEG_SLOPE * z1)

    # stage 2: conv_1_2 GEMM; branch-2 columns ride through an identity block, and the
    # per-lane slope vector (NEG_SLOPE on conv_1_2 lanes, 1.0 on passthrough/pad lanes)
    # replaces the iota/compare mask.
    z2 = jnp.dot(h13.astype(jnp.bfloat16), a2_ref[...],
                 preferred_element_type=jnp.float32)
    z2 = z2 + b2_ref[...]
    h = jnp.where(z2 > 0, z2, z2 * slope_ref[...])

    # BN partials in f32.  Padded rows must be excluded: their h is nonzero because
    # the biases propagate through both GEMMs and the LeakyReLUs.
    if mask_rows:
        ridx = pl.program_id(0) * tm + jax.lax.broadcasted_iota(jnp.int32, h.shape, 0)
        hs = jnp.where(ridx < m_valid, h, 0.0)
    else:
        hs = h
    s = jnp.sum(hs, axis=0, keepdims=True)                       # (1, NCATP)
    ss = jnp.sum(hs * hs, axis=0, keepdims=True)                 # (1, NCATP)
    rid = jax.lax.broadcasted_iota(jnp.int32, (8, h.shape[1]), 0)
    sb = jnp.broadcast_to(s, (8, h.shape[1]))
    ssb = jnp.broadcast_to(ss, (8, h.shape[1]))
    st_ref[...] = jnp.where(rid == 0, sb, jnp.where(rid == 1, ssb, 0.0))

    # bf16 activation slab store (halves slab HBM traffic; BN affine applied in the
    # fused wrapper epilogue).  Single lane-dense (TM, 128) store.
    h_ref[...] = h.astype(jnp.bfloat16)


# -------------------------------------------------------------------------- wrapper
def compressnet_forward(x, params):
    """x: (N, 1, H, W) float32 NCHW -> (N, 12, H, WOUT) float32."""
    w11, b11, w12, b12, w21, b21, gamma, beta = params
    N, cin, H, W = x.shape
    assert cin == 1
    M = N * H

    # ---- parameter folding (numpy glue, runs once) ----
    A1, b1e, wp1 = _conv_pool_matrix(np.asarray(w11)[:, :, 0, :], b11, W, 1, 10)
    A2, b2e, wp2 = _conv_pool_matrix(np.asarray(w12)[:, :, 0, :], b12, wp1, 1, 3)
    A3, b3e, wp3 = _conv_pool_matrix(np.asarray(w21)[:, :, 0, :], b21, W, 12, 4)
    assert wp2 == wp3, "branch widths must match for torch.cat(dim=1)"
    wout = wp2
    c1, c3 = A1.shape[1], A3.shape[1]        # 4*wp1, 4*wout
    c13 = c1 + c3
    nh2 = A2.shape[1]                        # 8*wout
    ncat = nh2 + c3                          # 12*wout

    C13P = _round_up(c13, 128)               # lane-aligned stage-1 output width
    NCATP = _round_up(ncat, 128)             # lane-aligned concat width (>= 128)

    # Stage-1 weights: exactly W contraction rows (x is passed unpadded).
    A13 = np.zeros((W, C13P), np.float32)
    A13[:, :c1] = A1
    A13[:, c1:c13] = A3
    b13 = np.zeros((1, C13P), np.float32)
    b13[0, :c1] = b1e
    b13[0, c1:c13] = b3e

    A2c = np.zeros((C13P, NCATP), np.float32)
    A2c[:c1, :nh2] = A2
    A2c[c1:c13, nh2:ncat] = np.eye(c3, dtype=np.float32)   # branch-2 pass-through
    b2c = np.zeros((1, NCATP), np.float32)
    b2c[0, :nh2] = b2e
    slope = np.ones((1, NCATP), np.float32)                 # 1.0 on passthrough/pad
    slope[0, :nh2] = NEG_SLOPE                               # LeakyReLU lanes

    a13_j = jnp.asarray(A13, jnp.bfloat16)   # bf16 MXU operands (f32 accumulation)
    a2c_j = jnp.asarray(A2c, jnp.bfloat16)
    b13_j = jnp.asarray(b13)
    b2c_j = jnp.asarray(b2c)
    slope_j = jnp.asarray(slope)

    TM = _choose_row_tile(M)
    M_pad = _round_up(M, TM)
    n_tiles = M_pad // TM
    mask_rows = (M_pad != M)

    x2 = jnp.asarray(x, jnp.float32).reshape(M, W)   # free reshape; no pad/cast pass
    if mask_rows:
        x2 = jnp.pad(x2, ((0, M_pad - M), (0, 0)))   # only for "awkward" M

    cparams = pltpu.CompilerParams(dimension_semantics=("parallel",),
                                   vmem_limit_bytes=32 * 1024 * 1024)

    # ---- single fused pass: conv GEMMs + activations + per-tile BN partials ----
    stage = functools.partial(_stage_kernel, tm=TM, m_valid=M, mask_rows=mask_rows)
    h_pad, stats = pl.pallas_call(
        stage,
        out_shape=(jax.ShapeDtypeStruct((M_pad, NCATP), jnp.bfloat16),
                   jax.ShapeDtypeStruct((n_tiles, 8, NCATP), jnp.float32)),
        grid=(n_tiles,),
        in_specs=[pl.BlockSpec((TM, W), lambda i: (i, 0)),        # full-width x block
                  pl.BlockSpec((W, C13P), lambda i: (0, 0)),      # resident weights
                  pl.BlockSpec((1, C13P), lambda i: (0, 0)),
                  pl.BlockSpec((C13P, NCATP), lambda i: (0, 0)),
                  pl.BlockSpec((1, NCATP), lambda i: (0, 0)),
                  pl.BlockSpec((1, NCATP), lambda i: (0, 0))],
        out_specs=(pl.BlockSpec((TM, NCATP), lambda i: (i, 0)),
                   pl.BlockSpec((None, 8, NCATP), lambda i: (i, 0, 0))),
        compiler_params=cparams,
    )(x2, a13_j, b13_j, a2c_j, b2c_j, slope_j)

    # ---- tiny cross-tile combine (12 channels; parameter-scale work) ----
    tot = jnp.sum(stats, axis=0)                         # (8, NCATP); rows 0/1 used
    ch_s = tot[0, :ncat].reshape(12, wout).sum(-1)
    ch_ss = tot[1, :ncat].reshape(12, wout).sum(-1)
    cnt = float(M * wout)                                # true M (padded rows masked)
    mu = ch_s / cnt
    var = jnp.maximum(ch_ss / cnt - mu * mu, 0.0)        # biased var, clamped >= 0
    g = jnp.asarray(gamma, jnp.float32)
    bt = jnp.asarray(beta, jnp.float32)
    scale_ch = g * jax.lax.rsqrt(var + EPS)
    shift_ch = bt - mu * scale_ch

    # ---- fused epilogue: de-pad + f32 cast + BN affine + NCHW transpose ----
    hf = h_pad[:M, :ncat].astype(jnp.float32).reshape(M, 12, wout)
    out = hf * scale_ch[None, :, None] + shift_ch[None, :, None]
    return out.reshape(N, H, 12, wout).transpose(0, 2, 1, 3)


# ------------------------------------------------------------------ numpy reference
def _np_ref(x, params):
    w11, b11, w12, b12, w21, b21, gamma, beta = [np.asarray(p, np.float64) for p in params]
    x = np.asarray(x, np.float64)

    def conv_w(x, w, b, stride):
        N, Cin, H, Win = x.shape
        Cout, _, _, K = w.shape
        Wc = (Win - K) // stride + 1
        out = np.zeros((N, Cout, H, Wc))
        for t in range(Wc):
            seg = x[:, :, :, t * stride:t * stride + K]          # (N, Cin, H, K)
            out[:, :, :, t] = np.einsum('nchk,ock->noh', seg, w[:, :, 0, :])
        return out + b[None, :, None, None]

    def pool_w(x, p):
        Wc = x.shape[-1]
        Wp = (Wc - p) // p + 1
        return x[..., :Wp * p].reshape(x.shape[:-1] + (Wp, p)).mean(-1)

    def leaky(v):
        return np.where(v > 0, v, NEG_SLOPE * v)

    o11 = leaky(pool_w(conv_w(x, w11, b11, 1), 10))
    o12 = leaky(pool_w(conv_w(o11, w12, b12, 1), 3))
    o21 = leaky(pool_w(conv_w(x, w21, b21, 12), 4))
    out = np.concatenate([o12, o21], axis=1)
    mu = out.mean(axis=(0, 2, 3), keepdims=True)
    var = out.var(axis=(0, 2, 3), keepdims=True)                 # biased, like PyTorch BN fwd
    return ((out - mu) / np.sqrt(var + EPS) * gamma[None, :, None, None]
            + beta[None, :, None, None])


# ----------------------------------------------------------------------------- main
if __name__ == "__main__":
    key = jax.random.PRNGKey(0)
    # W = 438 is the geometry at which both branches produce matching width (8),
    # which the module's torch.cat(dim=1) requires.
    N, H, W = 2, 4, 438
    k = jax.random.split(key, 7)
    x = jax.random.normal(k[0], (N, 1, H, W), jnp.float32)
    w11 = 0.1 * jax.random.normal(k[1], (4, 1, 1, 32), jnp.float32)
    b11 = 0.1 * jax.random.normal(k[2], (4,), jnp.float32)
    w12 = 0.1 * jax.random.normal(k[3], (8, 4, 1, 16), jnp.float32)
    b12 = 0.1 * jax.random.normal(k[4], (8,), jnp.float32)
    w21 = 0.1 * jax.random.normal(k[5], (4, 1, 1, 64), jnp.float32)
    b21 = 0.1 * jax.random.normal(k[6], (4,), jnp.float32)
    gamma = jnp.ones((12,), jnp.float32)    # BatchNorm2d default affine init
    beta = jnp.zeros((12,), jnp.float32)
    # TODO(synk): BatchNorm2d running-stat buffer updates (momentum) are stateful and
    # not reproduced; normalization uses train-mode batch statistics as in forward().
    params = (w11, b11, w12, b12, w21, b21, gamma, beta)

    out = compressnet_forward(x, params)
    out = jax.block_until_ready(out)
    assert out.shape == (N, 12, H, 8), out.shape

    ref = _np_ref(np.asarray(x), params)
    # bf16 MXU operands + bf16 activation slab (per perf review) shift results by
    # O(1e-2) after BN normalization (divides by per-channel std); tolerance set
    # accordingly.
    np.testing.assert_allclose(np.asarray(out), ref, rtol=2e-2, atol=2e-2)
    print("KERNEL_OK")
</pallas_src>

<mosaic_0001>
module attributes {stable_mosaic.version = 11 : i64} {
  func.func @_stage_kernel(%arg0: i32, %arg1: memref<8x438xf32, #tpu.memory_space<vmem>>, %arg2: memref<438x256xbf16, #tpu.memory_space<vmem>>, %arg3: memref<1x256xf32, #tpu.memory_space<vmem>>, %arg4: memref<256x128xbf16, #tpu.memory_space<vmem>>, %arg5: memref<1x128xf32, #tpu.memory_space<vmem>>, %arg6: memref<1x128xf32, #tpu.memory_space<vmem>>, %arg7: memref<8x128xbf16, #tpu.memory_space<vmem>>, %arg8: memref<1x8x128xf32, #tpu.memory_space<vmem>>) attributes {dimension_semantics = [#tpu.dimension_semantics<parallel>], iteration_bounds = array<i64: 1>, scalar_prefetch = 0 : i64, scratch_operands = 0 : i64, tpu.core_type = #tpu.core_type<tc>, window_params = [{transform_indices = @transform_0, window_bounds = array<i64: 8, 438>}, {pipeline_mode = #tpu.pipeline_mode<synchronous>, transform_indices = @transform_1, window_bounds = array<i64: 438, 256>}, {pipeline_mode = #tpu.pipeline_mode<synchronous>, transform_indices = @transform_2, window_bounds = array<i64: 1, 256>}, {pipeline_mode = #tpu.pipeline_mode<synchronous>, transform_indices = @transform_3, window_bounds = array<i64: 256, 128>}, {pipeline_mode = #tpu.pipeline_mode<synchronous>, transform_indices = @transform_4, window_bounds = array<i64: 1, 128>}, {pipeline_mode = #tpu.pipeline_mode<synchronous>, transform_indices = @transform_5, window_bounds = array<i64: 1, 128>}, {transform_indices = @transform_6, window_bounds = array<i64: 8, 128>}, {transform_indices = @transform_7, window_bounds = array<i64: 1, 8, 128>}]} {
    %c0 = arith.constant 0 : index
    %c0_0 = arith.constant 0 : index
    %0 = vector.load %arg1[%c0, %c0_0] : memref<8x438xf32, #tpu.memory_space<vmem>>, vector<8x438xf32>
    %1 = arith.truncf %0 : vector<8x438xf32> to vector<8x438xbf16>
    %c0_1 = arith.constant 0 : index
    %c0_2 = arith.constant 0 : index
    %2 = vector.load %arg2[%c0_1, %c0_2] : memref<438x256xbf16, #tpu.memory_space<vmem>>, vector<438x256xbf16>
    %cst = arith.constant dense<0.000000e+00> : vector<8x256xf32>
    %3 = tpu.matmul %1, %2, %cst {dimension_numbers = #tpu.dot_dimension_numbers<[1], [0], [0], [1], [0, 0, 1, 1], [], []>} : vector<8x438xbf16>, vector<438x256xbf16>, vector<8x256xf32> -> vector<8x256xf32>
    %c0_3 = arith.constant 0 : index
    %c0_4 = arith.constant 0 : index
    %4 = vector.load %arg3[%c0_3, %c0_4] : memref<1x256xf32, #tpu.memory_space<vmem>>, vector<1x256xf32>
    %5 = vector.broadcast %4 : vector<1x256xf32> to vector<8x256xf32>
    %6 = arith.addf %3, %5 : vector<8x256xf32>
    %cst_5 = arith.constant 0.000000e+00 : f32
    %7 = vector.broadcast %cst_5 : f32 to vector<8x256xf32>
    %8 = arith.cmpf ogt, %6, %7 : vector<8x256xf32>
    %cst_6 = arith.constant 1.500000e-01 : f32
    %9 = vector.broadcast %cst_6 : f32 to vector<8x256xf32>
    %10 = arith.mulf %9, %6 : vector<8x256xf32>
    %11 = arith.select %8, %6, %10 : vector<8x256xi1>, vector<8x256xf32>
    %12 = arith.truncf %11 : vector<8x256xf32> to vector<8x256xbf16>
    %c0_7 = arith.constant 0 : index
    %c0_8 = arith.constant 0 : index
    %13 = vector.load %arg4[%c0_7, %c0_8] : memref<256x128xbf16, #tpu.memory_space<vmem>>, vector<256x128xbf16>
    %cst_9 = arith.constant dense<0.000000e+00> : vector<8x128xf32>
    %14 = tpu.matmul %12, %13, %cst_9 {dimension_numbers = #tpu.dot_dimension_numbers<[1], [0], [0], [1], [0, 0, 1, 1], [], []>} : vector<8x256xbf16>, vector<256x128xbf16>, vector<8x128xf32> -> vector<8x128xf32>
    %c0_10 = arith.constant 0 : index
    %c0_11 = arith.constant 0 : index
    %15 = vector.load %arg5[%c0_10, %c0_11] : memref<1x128xf32, #tpu.memory_space<vmem>>, vector<1x128xf32>
    %16 = vector.broadcast %15 : vector<1x128xf32> to vector<8x128xf32>
    %17 = arith.addf %14, %16 : vector<8x128xf32>
    %cst_12 = arith.constant 0.000000e+00 : f32
    %18 = vector.broadcast %cst_12 : f32 to vector<8x128xf32>
    %19 = arith.cmpf ogt, %17, %18 : vector<8x128xf32>
    %c0_13 = arith.constant 0 : index
    %c0_14 = arith.constant 0 : index
    %20 = vector.load %arg6[%c0_13, %c0_14] : memref<1x128xf32, #tpu.memory_space<vmem>>, vector<1x128xf32>
    %21 = vector.broadcast %20 : vector<1x128xf32> to vector<8x128xf32>
    %22 = arith.mulf %17, %21 : vector<8x128xf32>
    %23 = arith.select %19, %17, %22 : vector<8x128xi1>, vector<8x128xf32>
    %cst_15 = arith.constant dense<0.000000e+00> : vector<128xf32>
    %24 = vector.multi_reduction <add>, %23, %cst_15 [0] : vector<8x128xf32> to vector<128xf32>
    %25 = vector.shape_cast %24 : vector<128xf32> to vector<1x128xf32>
    %26 = arith.mulf %23, %23 : vector<8x128xf32>
    %cst_16 = arith.constant dense<0.000000e+00> : vector<128xf32>
    %27 = vector.multi_reduction <add>, %26, %cst_16 [0] : vector<8x128xf32> to vector<128xf32>
    %28 = vector.shape_cast %27 : vector<128xf32> to vector<1x128xf32>
    %29 = tpu.iota {dimensions = array<i32: 0>} : vector<8x128xi32>
    %30 = vector.shape_cast %25 : vector<1x128xf32> to vector<1x128xf32>
    %31 = vector.broadcast %30 : vector<1x128xf32> to vector<8x128xf32>
    %32 = vector.shape_cast %28 : vector<1x128xf32> to vector<1x128xf32>
    %33 = vector.broadcast %32 : vector<1x128xf32> to vector<8x128xf32>
    %c0_i32 = arith.constant 0 : i32
    %34 = vector.broadcast %c0_i32 : i32 to vector<8x128xi32>
    %35 = arith.cmpi eq, %29, %34 : vector<8x128xi32>
    %c1_i32 = arith.constant 1 : i32
    %36 = vector.broadcast %c1_i32 : i32 to vector<8x128xi32>
    %37 = arith.cmpi eq, %29, %36 : vector<8x128xi32>
    %cst_17 = arith.constant 0.000000e+00 : f32
    %38 = vector.broadcast %cst_17 : f32 to vector<8x128xf32>
    %39 = arith.select %37, %33, %38 : vector<8x128xi1>, vector<8x128xf32>
    %40 = arith.select %35, %31, %39 : vector<8x128xi1>, vector<8x128xf32>
    %c0_18 = arith.constant 0 : index
    %c0_19 = arith.constant 0 : index
    %c0_20 = arith.constant 0 : index
    %41 = vector.load %arg8[%c0_18, %c0_19, %c0_20] : memref<1x8x128xf32, #tpu.memory_space<vmem>>, vector<1x8x128xf32>
    %42 = vector.shape_cast %41 : vector<1x8x128xf32> to vector<8x128xf32>
    %43 = vector.shape_cast %40 : vector<8x128xf32> to vector<1x8x128xf32>
    tpu.vector_store %arg8[%c0_18, %c0_19, %c0_20], %43 {strides = array<i32>} : memref<1x8x128xf32, #tpu.memory_space<vmem>>, vector<1x8x128xf32>,
    %44 = arith.truncf %23 : vector<8x128xf32> to vector<8x128xbf16>
    %c0_21 = arith.constant 0 : index
    %c0_22 = arith.constant 0 : index
    %45 = vector.load %arg7[%c0_21, %c0_22] : memref<8x128xbf16, #tpu.memory_space<vmem>>, vector<8x128xbf16>
    tpu.vector_store %arg7[%c0_21, %c0_22], %44 {strides = array<i32>} : memref<8x128xbf16, #tpu.memory_space<vmem>>, vector<8x128xbf16>,
    return
  }
  func.func @transform_0(%arg0: i32) -> (i32, i32) {
    %c0_i32 = arith.constant 0 : i32
    %c0_i32_0 = arith.constant 0 : i32
    return %arg0, %c0_i32 : i32, i32
  }
  func.func @transform_1(%arg0: i32) -> (i32, i32) {
    %c0_i32 = arith.constant 0 : i32
    %c0_i32_0 = arith.constant 0 : i32
    %c0_i32_1 = arith.constant 0 : i32
    return %c0_i32, %c0_i32_0 : i32, i32
  }
  func.func @transform_2(%arg0: i32) -> (i32, i32) {
    %c0_i32 = arith.constant 0 : i32
    %c0_i32_0 = arith.constant 0 : i32
    %c0_i32_1 = arith.constant 0 : i32
    return %c0_i32, %c0_i32_0 : i32, i32
  }
  func.func @transform_3(%arg0: i32) -> (i32, i32) {
    %c0_i32 = arith.constant 0 : i32
    %c0_i32_0 = arith.constant 0 : i32
    %c0_i32_1 = arith.constant 0 : i32
    return %c0_i32, %c0_i32_0 : i32, i32
  }
  func.func @transform_4(%arg0: i32) -> (i32, i32) {
    %c0_i32 = arith.constant 0 : i32
    %c0_i32_0 = arith.constant 0 : i32
    %c0_i32_1 = arith.constant 0 : i32
    return %c0_i32, %c0_i32_0 : i32, i32
  }
  func.func @transform_5(%arg0: i32) -> (i32, i32) {
    %c0_i32 = arith.constant 0 : i32
    %c0_i32_0 = arith.constant 0 : i32
    %c0_i32_1 = arith.constant 0 : i32
    return %c0_i32, %c0_i32_0 : i32, i32
  }
  func.func @transform_6(%arg0: i32) -> (i32, i32) {
    %c0_i32 = arith.constant 0 : i32
    %c0_i32_0 = arith.constant 0 : i32
    return %arg0, %c0_i32 : i32, i32
  }
  func.func @transform_7(%arg0: i32) -> (i32, i32, i32) {
    %c0_i32 = arith.constant 0 : i32
    %c0_i32_0 = arith.constant 0 : i32
    %c0_i32_1 = arith.constant 0 : i32
    return %arg0, %c0_i32, %c0_i32_0 : i32, i32, i32
  }
}

</mosaic_0001>

<llo_original>
// kernel: tpu_custom_call.1
$region0: #{tpu_custom_call.1}
  #allocation0 [shape = 'u32[]', space=smem, size = 0x4, offset = 0x4, fixed_abs, tag = 'smem constant byte address 0x4 - core index']
  #allocation1 [shape = 'u32[72,128]{1,0:T(1,128)}', space=vmem, size = 0x9000, scoped, tag = 'internal scratch']
  %s0 = inlined_call_operand.hbm [shape: f32[8,438], index: 0, kind: input, shape index: {}]
  %s1 = inlined_call_operand.hbm [shape: bf16[438,256], index: 1, kind: input, shape index: {}]
  %s2 = inlined_call_operand.hbm [shape: f32[1,256], index: 2, kind: input, shape index: {}]
  %s3 = inlined_call_operand.hbm [shape: bf16[256,128], index: 3, kind: input, shape index: {}]
  %s4 = inlined_call_operand.vmem [shape: f32[1,128], index: 4, kind: input, shape index: {}]
  %s5 = inlined_call_operand.vmem [shape: f32[1,128], index: 5, kind: input, shape index: {}]
  %s6 = inlined_call_operand.hbm [shape: bf16[8,128], index: 6, kind: output, shape index: {0}]
  %s7 = inlined_call_operand.hbm [shape: f32[1,8,128], index: 7, kind: output, shape index: {1}]
  %8 = xla_tuple %s6, %s7
  %s9 = sld [smem:[#allocation0]]
  $region58: #{tpu_custom_call.1} parent=0
    _
  %s11 = ssub.s32 1, %s9
  %s12 = scalar_select 0, %s11, %s9
  $region1: #{tpu_custom_call.1} parent=0
    #allocation2 [shape = 'u8[16384]{0}', space=vmem, size = 0x4000, scoped, tag = 'input window, operand 0, single buffered']
    #allocation3 [shape = 's32[1]{0}', space=sflag, size = 0x4, scoped, tag = 'scoped memory for tpu_custom_call.1']
    #allocation4 [shape = 's32[1]{0}', space=sflag, size = 0x4, scoped, tag = 'scoped memory for tpu_custom_call.1']
    #allocation5 [shape = 'u8[225280]{0}', space=vmem, size = 0x37000, scoped, tag = 'input window, operand 1, single buffered']
    #allocation6 [shape = 's32[1]{0}', space=sflag, size = 0x4, scoped, tag = 'scoped memory for tpu_custom_call.1']
    #allocation7 [shape = 'u8[1024]{0}', space=vmem, size = 0x400, scoped, tag = 'input window, operand 2, single buffered']
    #allocation8 [shape = 'u8[65536]{0}', space=vmem, size = 0x10000, scoped, tag = 'input window, operand 3, single buffered']
    #allocation9 [shape = 's32[1]{0}', space=sflag, size = 0x4, scoped, tag = 'scoped memory for tpu_custom_call.1']
    #allocation10 [shape = 'u8[2048]{0}', space=vmem, size = 0x800, scoped, tag = 'output window, operand 0, single buffered']
    #allocation11 [shape = 'u8[4096]{0}', space=vmem, size = 0x1000, scoped, tag = 'output window, operand 1, single buffered']
    #allocation12 [shape = 's32[1]{0}', space=sflag, size = 0x4, scoped, tag = 'scoped memory for tpu_custom_call.1']
    %13 = vsyncpa [#allocation3], 0
    %14 = vsyncpa [#allocation6], 0
    %15 = vsyncpa [#allocation9], 0
    %16 = vsyncpa [#allocation4], 0
    %17 = vsyncpa [#allocation12], 0
    // Predicated region
    $region2: #{tpu_custom_call.1} parent=1 // pred_check
      _
    $region3: #{tpu_custom_call.1} parent=1 // pred_check_branch
      %19 = sbr.rel (0) target = $region5
    $region4: #{tpu_custom_call.1} parent=1 // pred_region
      %21 = vsyncadd [#allocation3], 0
      %s23 = sshll.u32 %s0, 4
      %s24 = int_to_ptr.hbm [resolvable:$true] %s23
      %s25 = sshll.u32 [#allocation2], 4
      %s26 = int_to_ptr.vmem [resolvable:$true] %s25
      %28 = dma.hbm_to_vmem [thread:$0]  %s24, 512, %s26, [#allocation3]
    $region5: #{tpu_custom_call.1} parent=1 // pred_fallthru
      _
    // Predicated region
    $region6: #{tpu_custom_call.1} parent=1 // pred_check
      _
    $region7: #{tpu_custom_call.1} parent=1 // pred_check_branch
      %30 = sbr.rel (0) target = $region9
    $region8: #{tpu_custom_call.1} parent=1 // pred_region
      %32 = vsyncadd [#allocation6], 0
      %s33 = sshll.u32 %s1, 4
      %s34 = int_to_ptr.hbm [resolvable:$true] %s33
      %s35 = sshll.u32 [#allocation5], 4
      %s36 = int_to_ptr.vmem [resolvable:$true] %s35
      %41 = dma.hbm_to_vmem [thread:$0]  %s34, 7040, %s36, [#allocation6], 128, 128, 8
    $region9: #{tpu_custom_call.1} parent=1 // pred_fallthru
      _
    // Predicated region
    $region10: #{tpu_custom_call.1} parent=1 // pred_check
      _
    $region11: #{tpu_custom_call.1} parent=1 // pred_check_branch
      %43 = sbr.rel (0) target = $region13
    $region12: #{tpu_custom_call.1} parent=1 // pred_region
      %45 = vsyncadd [#allocation6], 0
      %s47 = sshll.u32 %s2, 4
      %s48 = int_to_ptr.hbm [resolvable:$true] %s47
      %s49 = sshll.u32 [#allocation7], 4
      %s50 = int_to_ptr.vmem [resolvable:$true] %s49
      %52 = dma.hbm_to_vmem [thread:$0]  %s48, 32, %s50, [#allocation6]
    $region13: #{tpu_custom_call.1} parent=1 // pred_fallthru
      _
    // Predicated region
    $region14: #{tpu_custom_call.1} parent=1 // pred_check
      _
    $region15: #{tpu_custom_call.1} parent=1 // pred_check_branch
      %54 = sbr.rel (0) target = $region17
    $region16: #{tpu_custom_call.1} parent=1 // pred_region
      %56 = vsyncadd [#allocation9], 0
      %s57 = sshll.u32 %s3, 4
      %s58 = int_to_ptr.hbm [resolvable:$true] %s57
      %s59 = sshll.u32 [#allocation8], 4
      %s60 = int_to_ptr.vmem [resolvable:$true] %s59
      %65 = dma.hbm_to_vmem [thread:$0]  %s58, 2048, %s60, [#allocation9], 64, 64, 4
    $region17: #{tpu_custom_call.1} parent=1 // pred_fallthru
      _
    // Predicated region
    $region18: #{tpu_custom_call.1} parent=1 // pred_check
      _
    $region19: #{tpu_custom_call.1} parent=1 // pred_check_branch
      %67 = sbr.rel (0) target = $region21
    $region20: #{tpu_custom_call.1} parent=1 // pred_region
      _
    $region21: #{tpu_custom_call.1} parent=1 // pred_fallthru
      _
    // Predicated region
    $region22: #{tpu_custom_call.1} parent=1 // pred_check
      _
    $region23: #{tpu_custom_call.1} parent=1 // pred_check_branch
      %69 = sbr.rel (0) target = $region25
    $region24: #{tpu_custom_call.1} parent=1 // pred_region
      _
    $region25: #{tpu_custom_call.1} parent=1 // pred_fallthru
      _
    // Predicated region
    $region26: #{tpu_custom_call.1} parent=1 // pred_check
      _
    $region27: #{tpu_custom_call.1} parent=1 // pred_check_branch
      %71 = sbr.rel (0) target = $region29
    $region28: #{tpu_custom_call.1} parent=1 // pred_region
      %73 = dma.done [#allocation3], 512
    $region29: #{tpu_custom_call.1} parent=1 // pred_fallthru
      _
    // Predicated region
    $region30: #{tpu_custom_call.1} parent=1 // pred_check
      _
    $region31: #{tpu_custom_call.1} parent=1 // pred_check_branch
      %75 = sbr.rel (0) target = $region33
    $region32: #{tpu_custom_call.1} parent=1 // pred_region
      %77 = dma.done [#allocation6], 7040
    $region33: #{tpu_custom_call.1} parent=1 // pred_fallthru
      _
    // Predicated region
    $region34: #{tpu_custom_call.1} parent=1 // pred_check
      _
    $region35: #{tpu_custom_call.1} parent=1 // pred_check_branch
      %79 = sbr.rel (0) target = $region37
    $region36: #{tpu_custom_call.1} parent=1 // pred_region
      %81 = dma.done [#allocation6], 32
    $region37: #{tpu_custom_call.1} parent=1 // pred_fallthru
      _
    // Predicated region
    $region38: #{tpu_custom_call.1} parent=1 // pred_check
      _
    $region39: #{tpu_custom_call.1} parent=1 // pred_check_branch
      %83 = sbr.rel (0) target = $region41
    $region40: #{tpu_custom_call.1} parent=1 // pred_region
      %85 = dma.done [#allocation9], 2048
    $region41: #{tpu_custom_call.1} parent=1 // pred_fallthru
      _
    %v87 = vld [vmem:[#allocation2] sm:$0xff]
    %v88 = vld [vmem:[#allocation2 + $0x8] sm:$0xff]
    %v89 = vld [vmem:[#allocation2 + $0x10] sm:$0xff]
    %v90 = vld [vmem:[#allocation2 + $0x18] sm:$0xff]
    %v91 = vpack.c.bf16 %v87, %v87
    %v92 = vpack.c.bf16 %v88, %v88
    %v93 = vpack.c.bf16 %v89, %v89
    %v94 = vpack.c.bf16 %v90, %v90
    %v95 = vld [vmem:[#allocation5] sm:$0xff]
    %v96 = vld [vmem:[#allocation5 + $0x8] sm:$0xff]
    %v97 = vld [vmem:[#allocation5 + $0x10] sm:$0xff]
    %v98 = vld [vmem:[#allocation5 + $0x18] sm:$0xff]
    %v99 = vld [vmem:[#allocation5 + $0x20] sm:$0xff]
    %v100 = vld [vmem:[#allocation5 + $0x28] sm:$0xff]
    %v101 = vld [vmem:[#allocation5 + $0x30] sm:$0xff]
    %v102 = vld [vmem:[#allocation5 + $0x38] sm:$0xff]
    %v103 = vld [vmem:[#allocation5 + $0x40] sm:$0xff]
    %v104 = vld [vmem:[#allocation5 + $0x48] sm:$0xff]
    %v105 = vld [vmem:[#allocation5 + $0x50] sm:$0xff]
    %v106 = vld [vmem:[#allocation5 + $0x58] sm:$0xff]
    %v107 = vld [vmem:[#allocation5 + $0x60] sm:$0xff]
    %v108 = vld [vmem:[#allocation5 + $0x68] sm:$0xff]
    %v109 = vld [vmem:[#allocation5 + $0x70] sm:$0xff]
    %v110 = vld [vmem:[#allocation5 + $0x78] sm:$0xff]
    %v111 = vld [vmem:[#allocation5 + $0x80] sm:$0xff]
    %v112 = vld [vmem:[#allocation5 + $0x88] sm:$0xff]
    %v113 = vld [vmem:[#allocation5 + $0x90] sm:$0xff]
    %v114 = vld [vmem:[#allocation5 + $0x98] sm:$0xff]
    %v115 = vld [vmem:[#allocation5 + $0xa0] sm:$0xff]
    %v116 = vld [vmem:[#allocation5 + $0xa8] sm:$0xff]
    %v117 = vld [vmem:[#allocation5 + $0xb0] sm:$0xff]
    %v118 = vld [vmem:[#allocation5 + $0xb8] sm:$0xff]
    %v119 = vld [vmem:[#allocation5 + $0xc0] sm:$0xff]
    %v120 = vld [vmem:[#allocation5 + $0xc8] sm:$0xff]
    %v121 = vld [vmem:[#allocation5 + $0xd0] sm:$0xff]
    %v122 = vld [vmem:[#allocation5 + $0xd8] sm:$0xff]
    %v123 = vld [vmem:[#allocation5 + $0xe0] sm:$0xff]
    %v124 = vld [vmem:[#allocation5 + $0xe8] sm:$0xff]
    %v125 = vld [vmem:[#allocation5 + $0xf0] sm:$0xff]
    %v126 = vld [vmem:[#allocation5 + $0xf8] sm:$0xff]
    %v127 = vld [vmem:[#allocation5 + $0x100] sm:$0xff]
    %v128 = vld [vmem:[#allocation5 + $0x108] sm:$0xff]
    %v129 = vld [vmem:[#allocation5 + $0x110] sm:$0xff]
    %v130 = vld [vmem:[#allocation5 + $0x118] sm:$0xff]
    %v131 = vld [vmem:[#allocation5 + $0x120] sm:$0xff]
    %v132 = vld [vmem:[#allocation5 + $0x128] sm:$0xff]
    %v133 = vld [vmem:[#allocation5 + $0x130] sm:$0xff]
    %v134 = vld [vmem:[#allocation5 + $0x138] sm:$0xff]
    %v135 = vld [vmem:[#allocation5 + $0x140] sm:$0xff]
    %v136 = vld [vmem:[#allocation5 + $0x148] sm:$0xff]
    %v137 = vld [vmem:[#allocation5 + $0x150] sm:$0xff]
    %v138 = vld [vmem:[#allocation5 + $0x158] sm:$0xff]
    %v139 = vld [vmem:[#allocation5 + $0x160] sm:$0xff]
    %v140 = vld [vmem:[#allocation5 + $0x168] sm:$0xff]
    %v141 = vld [vmem:[#allocation5 + $0x170] sm:$0xff]
    %v142 = vld [vmem:[#allocation5 + $0x178] sm:$0xff]
    %v143 = vld [vmem:[#allocation5 + $0x180] sm:$0xff]
    %v144 = vld [vmem:[#allocation5 + $0x188] sm:$0xff]
    %v145 = vld [vmem:[#allocation5 + $0x190] sm:$0xff]
    %v146 = vld [vmem:[#allocation5 + $0x198] sm:$0xff]
    %v147 = vld [vmem:[#allocation5 + $0x1a0] sm:$0xff]
    %v148 = vld [vmem:[#allocation5 + $0x1a8] sm:$0xff]
    %v149 = vld [vmem:[#allocation5 + $0x1b0] sm:$0x77]
    %v150 = vld [vmem:[#allocation7] sm:$0x3]
    %v152 = vperm.slane %v150, 0
    %v153 = vperm.slane %v150, 1
    %v211 = vunpack.c.l.b16 %v95
    %v212 = vunpack.c.h.b16 %v95
    %v213 = vunpack.c.l.b16 %v96
    %v214 = vunpack.c.h.b16 %v96
    %v215 = vunpack.c.l.b16 %v97
    %v216 = vunpack.c.h.b16 %v97
    %v217 = vunpack.c.l.b16 %v98
    %v218 = vunpack.c.h.b16 %v98
    %v219 = vunpack.c.l.b16 %v99
    %v220 = vunpack.c.h.b16 %v99
    %v221 = vunpack.c.l.b16 %v100
    %v222 = vunpack.c.h.b16 %v100
    %v223 = vunpack.c.l.b16 %v101
    %v224 = vunpack.c.h.b16 %v101
    %v225 = vunpack.c.l.b16 %v102
    %v226 = vunpack.c.h.b16 %v102
    %v227 = vunpack.c.l.b16 %v103
    %v228 = vunpack.c.h.b16 %v103
    %v229 = vunpack.c.l.b16 %v104
    %v230 = vunpack.c.h.b16 %v104
    %v231 = vunpack.c.l.b16 %v105
    %v232 = vunpack.c.h.b16 %v105
    %v233 = vunpack.c.l.b16 %v106
    %v234 = vunpack.c.h.b16 %v106
    %v235 = vunpack.c.l.b16 %v107
    %v236 = vunpack.c.h.b16 %v107
    %v237 = vunpack.c.l.b16 %v108
    %v238 = vunpack.c.h.b16 %v108
    %v239 = vunpack.c.l.b16 %v109
    %v240 = vunpack.c.h.b16 %v109
    %v241 = vunpack.c.l.b16 %v110
    %v242 = vunpack.c.h.b16 %v110
    %v243 = vunpack.c.l.b16 %v111
    %v244 = vunpack.c.h.b16 %v111
    %v245 = vunpack.c.l.b16 %v112
    %v246 = vunpack.c.h.b16 %v112
    %v247 = vunpack.c.l.b16 %v113
    %v248 = vunpack.c.h.b16 %v113
    %v249 = vunpack.c.l.b16 %v114
    %v250 = vunpack.c.h.b16 %v114
    %v251 = vunpack.c.l.b16 %v115
    %v252 = vunpack.c.h.b16 %v115
    %v253 = vunpack.c.l.b16 %v116
    %v254 = vunpack.c.h.b16 %v116
    %v255 = vunpack.c.l.b16 %v117
    %v256 = vunpack.c.h.b16 %v117
    %v257 = vunpack.c.l.b16 %v118
    %v258 = vunpack.c.h.b16 %v118
    %v259 = vunpack.c.l.b16 %v119
    %v260 = vunpack.c.h.b16 %v119
    %v261 = vunpack.c.l.b16 %v120
    %v262 = vunpack.c.h.b16 %v120
    %v263 = vunpack.c.l.b16 %v121
    %v264 = vunpack.c.h.b16 %v121
    %v265 = vunpack.c.l.b16 %v122
    %v266 = vunpack.c.h.b16 %v122
    %v267 = vunpack.c.l.b16 %v123
    %v268 = vunpack.c.h.b16 %v123
    %v269 = vunpack.c.l.b16 %v124
    %v270 = vunpack.c.h.b16 %v124
    %v271 = vunpack.c.l.b16 %v125
    %v272 = vunpack.c.h.b16 %v125
    %v273 = vunpack.c.l.b16 %v126
    %v274 = vunpack.c.h.b16 %v126
    %v275 = vunpack.c.l.b16 %v127
    %v276 = vunpack.c.h.b16 %v127
    %v277 = vunpack.c.l.b16 %v128
    %v278 = vunpack.c.h.b16 %v128
    %v279 = vunpack.c.l.b16 %v129
    %v280 = vunpack.c.h.b16 %v129
    %v281 = vunpack.c.l.b16 %v130
    %v282 = vunpack.c.h.b16 %v130
    %v283 = vunpack.c.l.b16 %v131
    %v284 = vunpack.c.h.b16 %v131
    %v285 = vunpack.c.l.b16 %v132
    %v286 = vunpack.c.h.b16 %v132
    %v287 = vunpack.c.l.b16 %v133
    %v288 = vunpack.c.h.b16 %v133
    %v289 = vunpack.c.l.b16 %v134
    %v290 = vunpack.c.h.b16 %v134
    %v291 = vunpack.c.l.b16 %v135
    %v292 = vunpack.c.h.b16 %v135
    %v293 = vunpack.c.l.b16 %v136
    %v294 = vunpack.c.h.b16 %v136
    %v295 = vunpack.c.l.b16 %v137
    %v296 = vunpack.c.h.b16 %v137
    %v297 = vunpack.c.l.b16 %v138
    %v298 = vunpack.c.h.b16 %v138
    %v299 = vunpack.c.l.b16 %v139
    %v300 = vunpack.c.h.b16 %v139
    %v301 = vunpack.c.l.b16 %v140
    %v302 = vunpack.c.h.b16 %v140
    %v303 = vunpack.c.l.b16 %v141
    %v304 = vunpack.c.h.b16 %v141
    %v305 = vunpack.c.l.b16 %v142
    %v306 = vunpack.c.h.b16 %v142
    %v307 = vunpack.c.l.b16 %v143
    %v308 = vunpack.c.h.b16 %v143
    %v309 = vunpack.c.l.b16 %v144
    %v310 = vunpack.c.h.b16 %v144
    %v311 = vunpack.c.l.b16 %v145
    %v312 = vunpack.c.h.b16 %v145
    %v313 = vunpack.c.l.b16 %v146
    %v314 = vunpack.c.h.b16 %v146
    %v315 = vunpack.c.l.b16 %v147
    %v316 = vunpack.c.h.b16 %v147
    %v317 = vunpack.c.l.b16 %v148
    %v318 = vunpack.c.h.b16 %v148
    %v319 = vunpack.c.l.b16 %v149
    %v320 = vunpack.c.h.b16 %v149
    %v321 = vpack.c.b16 %v213, %v211
    %v322 = vpack.c.b16 %v214, %v212
    %v323 = vpack.c.b16 %v217, %v215
    %v324 = vpack.c.b16 %v218, %v216
    %v325 = vpack.c.b16 %v221, %v219
    %v326 = vpack.c.b16 %v222, %v220
    %v327 = vpack.c.b16 %v225, %v223
    %v328 = vpack.c.b16 %v226, %v224
    %v329 = vpack.c.b16 %v229, %v227
    %v330 = vpack.c.b16 %v230, %v228
    %v331 = vpack.c.b16 %v233, %v231
    %v332 = vpack.c.b16 %v234, %v232
    %v333 = vpack.c.b16 %v237, %v235
    %v334 = vpack.c.b16 %v238, %v236
    %v335 = vpack.c.b16 %v241, %v239
    %v336 = vpack.c.b16 %v242, %v240
    %v337 = vpack.c.b16 %v245, %v243
    %v338 = vpack.c.b16 %v246, %v244
    %v339 = vpack.c.b16 %v249, %v247
    %v340 = vpack.c.b16 %v250, %v248
    %v341 = vpack.c.b16 %v253, %v251
    %v342 = vpack.c.b16 %v254, %v252
    %v343 = vpack.c.b16 %v257, %v255
    %v344 = vpack.c.b16 %v258, %v256
    %v345 = vpack.c.b16 %v261, %v259
    %v346 = vpack.c.b16 %v262, %v260
    %v347 = vpack.c.b16 %v265, %v263
    %v348 = vpack.c.b16 %v266, %v264
    %v349 = vpack.c.b16 %v269, %v267
    %v350 = vpack.c.b16 %v270, %v268
    %v351 = vpack.c.b16 %v273, %v271
    %v352 = vpack.c.b16 %v274, %v272
    %v353 = vpack.c.b16 %v277, %v275
    %v354 = vpack.c.b16 %v278, %v276
    %v355 = vpack.c.b16 %v281, %v279
    %v356 = vpack.c.b16 %v282, %v280
    %v357 = vpack.c.b16 %v285, %v283
    %v358 = vpack.c.b16 %v286, %v284
    %v359 = vpack.c.b16 %v289, %v287
    %v360 = vpack.c.b16 %v290, %v288
    %v361 = vpack.c.b16 %v293, %v291
    %v362 = vpack.c.b16 %v294, %v292
    %v363 = vpack.c.b16 %v297, %v295
    %v364 = vpack.c.b16 %v298, %v296
    %v365 = vpack.c.b16 %v301, %v299
    %v366 = vpack.c.b16 %v302, %v300
    %v367 = vpack.c.b16 %v305, %v303
    %v368 = vpack.c.b16 %v306, %v304
    %v369 = vpack.c.b16 %v309, %v307
    %v370 = vpack.c.b16 %v310, %v308
    %v371 = vpack.c.b16 %v313, %v311
    %v372 = vpack.c.b16 %v314, %v312
    %v373 = vpack.c.b16 %v317, %v315
    %v374 = vpack.c.b16 %v318, %v316
    %v375 = vpack.c.b16 %v319, %v319
    %v376 = vpack.c.b16 %v320, %v320
    %vm431 = vcmask 441344
    %v433 = vsel %vm431, %v94, 0
    %vm435 = vcmask 1042432
    %v437 = vsel %vm435, %v375, 0
    %v440 = vsel %vm435, %v376, 0
    %442 = vmatpush.bf16.msra.mxu0 %v335
    %443 = vmatpush.bf16.msra.mxu0 %v333
    %444 = vmatpush.bf16.msra.mxu0 %v331
    %445 = vmatpush.bf16.msra.mxu0 %v329
    %446 = vmatpush.bf16.msra.mxu0 %v327
    %447 = vmatpush.bf16.msra.mxu0 %v325
    %448 = vmatpush.bf16.msra.mxu0 %v323
    %449 = vmatpush.bf16.msra.mxu0 %v321
    %450 = vmatmul.bf16.gmra.mxu0 %v91
    %v451 = vpop.f32.mrf.mxu0
    %v452 = vadd.f32 %v152, %v451
    %v453 = vpop.f32.mrf.mxu0
    %454 = vdwg.mxu0
    %455 = vmatpush.bf16.msra.mxu0 %v351
    %456 = vmatpush.bf16.msra.mxu0 %v349
    %457 = vmatpush.bf16.msra.mxu0 %v347
    %458 = vmatpush.bf16.msra.mxu0 %v345
    %459 = vmatpush.bf16.msra.mxu0 %v343
    %460 = vmatpush.bf16.msra.mxu0 %v341
    %461 = vmatpush.bf16.msra.mxu0 %v339
    %462 = vmatpush.bf16.msra.mxu0 %v337
    %463 = vmatmul.bf16.gmra.mxu0 %v92
    %v464 = vpop.f32.mrf.mxu0
    %v465 = vadd.f32 %v452, %v464
    %v466 = vpop.f32.mrf.mxu0
    %467 = vdwg.mxu0
    %468 = vmatpush.bf16.msra.mxu0 %v367
    %469 = vmatpush.bf16.msra.mxu0 %v365
    %470 = vmatpush.bf16.msra.mxu0 %v363
    %471 = vmatpush.bf16.msra.mxu0 %v361
    %472 = vmatpush.bf16.msra.mxu0 %v359
    %473 = vmatpush.bf16.msra.mxu0 %v357
    %474 = vmatpush.bf16.msra.mxu0 %v355
    %475 = vmatpush.bf16.msra.mxu0 %v353
    %476 = vmatmul.bf16.gmra.mxu0 %v93
    %v477 = vpop.f32.mrf.mxu0
    %v478 = vadd.f32 %v465, %v477
    %v479 = vpop.f32.mrf.mxu0
    %480 = vdwg.mxu0
    %481 = vmatpush.bf16.msra.mxu0 0
    %482 = vmatpush.bf16.msra.mxu0 0
    %483 = vmatpush.bf16.msra.mxu0 0
    %484 = vmatpush.bf16.msra.mxu0 0
    %485 = vmatpush.bf16.msra.mxu0 %v437
    %486 = vmatpush.bf16.msra.mxu0 %v373
    %487 = vmatpush.bf16.msra.mxu0 %v371
    %488 = vmatpush.bf16.msra.mxu0 %v369
    %489 = vmatmul.bf16.gmra.mxu0 %v433
    %v490 = vpop.f32.mrf.mxu0
    %v491 = vadd.f32 %v478, %v490
    %v492 = vpop.f32.mrf.mxu0
    %493 = vdwg.mxu0
    %494 = vmatpush.bf16.msra.mxu0 %v336
    %495 = vmatpush.bf16.msra.mxu0 %v334
    %496 = vmatpush.bf16.msra.mxu0 %v332
    %497 = vmatpush.bf16.msra.mxu0 %v330
    %498 = vmatpush.bf16.msra.mxu0 %v328
    %499 = vmatpush.bf16.msra.mxu0 %v326
    %500 = vmatpush.bf16.msra.mxu0 %v324
    %501 = vmatpush.bf16.msra.mxu0 %v322
    %502 = vmatmul.bf16.gmra.mxu0 %v91
    %v503 = vpop.f32.mrf.mxu0
    %v504 = vadd.f32 %v153, %v503
    %v505 = vpop.f32.mrf.mxu0
    %506 = vdwg.mxu0
    %507 = vmatpush.bf16.msra.mxu0 %v352
    %508 = vmatpush.bf16.msra.mxu0 %v350
    %509 = vmatpush.bf16.msra.mxu0 %v348
    %510 = vmatpush.bf16.msra.mxu0 %v346
    %511 = vmatpush.bf16.msra.mxu0 %v344
    %512 = vmatpush.bf16.msra.mxu0 %v342
    %513 = vmatpush.bf16.msra.mxu0 %v340
    %514 = vmatpush.bf16.msra.mxu0 %v338
    %515 = vmatmul.bf16.gmra.mxu0 %v92
    %v516 = vpop.f32.mrf.mxu0
    %v517 = vadd.f32 %v504, %v516
    %v518 = vpop.f32.mrf.mxu0
    %519 = vdwg.mxu0
    %520 = vmatpush.bf16.msra.mxu0 %v368
    %521 = vmatpush.bf16.msra.mxu0 %v366
    %522 = vmatpush.bf16.msra.mxu0 %v364
    %523 = vmatpush.bf16.msra.mxu0 %v362
    %524 = vmatpush.bf16.msra.mxu0 %v360
    %525 = vmatpush.bf16.msra.mxu0 %v358
    %526 = vmatpush.bf16.msra.mxu0 %v356
    %527 = vmatpush.bf16.msra.mxu0 %v354
    %528 = vmatmul.bf16.gmra.mxu0 %v93
    %v529 = vpop.f32.mrf.mxu0
    %v530 = vadd.f32 %v517, %v529
    %v531 = vpop.f32.mrf.mxu0
    %532 = vdwg.mxu0
    %533 = vmatpush.bf16.msra.mxu0 0
    %534 = vmatpush.bf16.msra.mxu0 0
    %535 = vmatpush.bf16.msra.mxu0 0
    %536 = vmatpush.bf16.msra.mxu0 0
    %537 = vmatpush.bf16.msra.mxu0 %v440
    %538 = vmatpush.bf16.msra.mxu0 %v374
    %539 = vmatpush.bf16.msra.mxu0 %v372
    %540 = vmatpush.bf16.msra.mxu0 %v370
    %541 = vmatmul.bf16.gmra.mxu0 %v433
    %v542 = vpop.f32.mrf.mxu0
    %v543 = vadd.f32 %v530, %v542
    %v544 = vpop.f32.mrf.mxu0
    %545 = vdwg.mxu0
    %vm546 = vcmp.gt.f32.partialorder %v491, 0.0
    %vm547 = vcmp.gt.f32.partialorder %v543, 0.0
    %v548 = vmul.f32 %v491, 0.15
    %v549 = vmul.f32 %v543, 0.15
    %v550 = vsel %vm546, %v491, %v548
    %v551 = vsel %vm547, %v543, %v549
    %v552 = vpack.c.bf16 %v550, %v550
    %v553 = vpack.c.bf16 %v551, %v551
    %v554 = vld [vmem:[#allocation8] sm:$0xf]
    %v555 = vld [vmem:[#allocation8 + $0x4] sm:$0xf]
    %v556 = vld [vmem:[#allocation8 + $0x8] sm:$0xf]
    %v557 = vld [vmem:[#allocation8 + $0xc] sm:$0xf]
    %v558 = vld [vmem:[#allocation8 + $0x10] sm:$0xf]
    %v559 = vld [vmem:[#allocation8 + $0x14] sm:$0xf]
    %v560 = vld [vmem:[#allocation8 + $0x18] sm:$0xf]
    %v561 = vld [vmem:[#allocation8 + $0x1c] sm:$0xf]
    %v562 = vld [vmem:[#allocation8 + $0x20] sm:$0xf]
    %v563 = vld [vmem:[#allocation8 + $0x24] sm:$0xf]
    %v564 = vld [vmem:[#allocation8 + $0x28] sm:$0xf]
    %v565 = vld [vmem:[#allocation8 + $0x2c] sm:$0xf]
    %v566 = vld [vmem:[#allocation8 + $0x30] sm:$0xf]
    %v567 = vld [vmem:[#allocation8 + $0x34] sm:$0xf]
    %v568 = vld [vmem:[#allocation8 + $0x38] sm:$0xf]
    %v569 = vld [vmem:[#allocation8 + $0x3c] sm:$0xf]
    %v570 = vld [vmem:[#allocation8 + $0x40] sm:$0xf]
    %v571 = vld [vmem:[#allocation8 + $0x44] sm:$0xf]
    %v572 = vld [vmem:[#allocation8 + $0x48] sm:$0xf]
    %v573 = vld [vmem:[#allocation8 + $0x4c] sm:$0xf]
    %v574 = vld [vmem:[#allocation8 + $0x50] sm:$0xf]
    %v575 = vld [vmem:[#allocation8 + $0x54] sm:$0xf]
    %v576 = vld [vmem:[#allocation8 + $0x58] sm:$0xf]
    %v577 = vld [vmem:[#allocation8 + $0x5c] sm:$0xf]
    %v578 = vld [vmem:[#allocation8 + $0x60] sm:$0xf]
    %v579 = vld [vmem:[#allocation8 + $0x64] sm:$0xf]
    %v580 = vld [vmem:[#allocation8 + $0x68] sm:$0xf]
    %v581 = vld [vmem:[#allocation8 + $0x6c] sm:$0xf]
    %v582 = vld [vmem:[#allocation8 + $0x70] sm:$0xf]
    %v583 = vld [vmem:[#allocation8 + $0x74] sm:$0xf]
    %v584 = vld [vmem:[#allocation8 + $0x78] sm:$0xf]
    %v585 = vld [vmem:[#allocation8 + $0x7c] sm:$0xf]
    %v586 = vld [vmem:[%s4] sm:$0x1]
    %v588 = vperm.slane %v586, 0
    %v622 = vunpack.c.l.b16 %v554
    %v623 = vunpack.c.l.b16 %v555
    %v624 = vunpack.c.l.b16 %v556
    %v625 = vunpack.c.l.b16 %v557
    %v626 = vunpack.c.l.b16 %v558
    %v627 = vunpack.c.l.b16 %v559
    %v628 = vunpack.c.l.b16 %v560
    %v629 = vunpack.c.l.b16 %v561
    %v630 = vunpack.c.l.b16 %v562
    %v631 = vunpack.c.l.b16 %v563
    %v632 = vunpack.c.l.b16 %v564
    %v633 = vunpack.c.l.b16 %v565
    %v634 = vunpack.c.l.b16 %v566
    %v635 = vunpack.c.l.b16 %v567
    %v636 = vunpack.c.l.b16 %v568
    %v637 = vunpack.c.l.b16 %v569
    %v638 = vunpack.c.l.b16 %v570
    %v639 = vunpack.c.l.b16 %v571
    %v640 = vunpack.c.l.b16 %v572
    %v641 = vunpack.c.l.b16 %v573
    %v642 = vunpack.c.l.b16 %v574
    %v643 = vunpack.c.l.b16 %v575
    %v644 = vunpack.c.l.b16 %v576
    %v645 = vunpack.c.l.b16 %v577
    %v646 = vunpack.c.l.b16 %v578
    %v647 = vunpack.c.l.b16 %v579
    %v648 = vunpack.c.l.b16 %v580
    %v649 = vunpack.c.l.b16 %v581
    %v650 = vunpack.c.l.b16 %v582
    %v651 = vunpack.c.l.b16 %v583
    %v652 = vunpack.c.l.b16 %v584
    %v653 = vunpack.c.l.b16 %v585
    %v654 = vpack.c.b16 %v623, %v622
    %v655 = vpack.c.b16 %v625, %v624
    %v656 = vpack.c.b16 %v627, %v626
    %v657 = vpack.c.b16 %v629, %v628
    %v658 = vpack.c.b16 %v631, %v630
    %v659 = vpack.c.b16 %v633, %v632
    %v660 = vpack.c.b16 %v635, %v634
    %v661 = vpack.c.b16 %v637, %v636
    %v662 = vpack.c.b16 %v639, %v638
    %v663 = vpack.c.b16 %v641, %v640
    %v664 = vpack.c.b16 %v643, %v642
    %v665 = vpack.c.b16 %v645, %v644
    %v666 = vpack.c.b16 %v647, %v646
    %v667 = vpack.c.b16 %v649, %v648
    %v668 = vpack.c.b16 %v651, %v650
    %v669 = vpack.c.b16 %v653, %v652
    %686 = vmatpush.bf16.msra.mxu0 %v661
    %687 = vmatpush.bf16.msra.mxu0 %v660
    %688 = vmatpush.bf16.msra.mxu0 %v659
    %689 = vmatpush.bf16.msra.mxu0 %v658
    %690 = vmatpush.bf16.msra.mxu0 %v657
    %691 = vmatpush.bf16.msra.mxu0 %v656
    %692 = vmatpush.bf16.msra.mxu0 %v655
    %693 = vmatpush.bf16.msra.mxu0 %v654
    %694 = vmatmul.bf16.gmra.mxu0 %v552
    %v695 = vpop.f32.mrf.mxu0
    %v696 = vadd.f32 %v588, %v695
    %v697 = vpop.f32.mrf.mxu0
    %698 = vdwg.mxu0
    %699 = vmatpush.bf16.msra.mxu0 %v669
    %700 = vmatpush.bf16.msra.mxu0 %v668
    %701 = vmatpush.bf16.msra.mxu0 %v667
    %702 = vmatpush.bf16.msra.mxu0 %v666
    %703 = vmatpush.bf16.msra.mxu0 %v665
    %704 = vmatpush.bf16.msra.mxu0 %v664
    %705 = vmatpush.bf16.msra.mxu0 %v663
    %706 = vmatpush.bf16.msra.mxu0 %v662
    %707 = vmatmul.bf16.gmra.mxu0 %v553
    %v708 = vpop.f32.mrf.mxu0
    %v709 = vadd.f32 %v696, %v708
    %v710 = vpop.f32.mrf.mxu0
    %711 = vdwg.mxu0
    %vm712 = vcmp.gt.f32.partialorder %v709, 0.0
    %v713 = vld [vmem:[%s5] sm:$0x1]
    %v715 = vperm.slane %v713, 0
    %v717 = vmul.f32 %v709, %v715
    %v718 = vsel %vm712, %v709, %v717
    %v719 = vrot.slane %v718, 4
    %v720 = vadd.f32 %v718, %v719
    %v721 = vrot.slane %v720, 2
    %v722 = vadd.f32 %v720, %v721
    %v723 = vrot.slane %v722, 1
    %v724 = vadd.f32 %v722, %v723
    %v725 = vmul.f32 %v718, %v718
    %v726 = vrot.slane %v725, 4
    %v727 = vadd.f32 %v725, %v726
    %v728 = vrot.slane %v727, 2
    %v729 = vadd.f32 %v727, %v728
    %v730 = vrot.slane %v729, 1
    %v731 = vadd.f32 %v729, %v730
    %v732 = vlaneseq
    %v733 = vshrl.u32 %v732, 7
    %vm734 = vcmp.eq.s32.totalorder %v733, 0
    %vm735 = vcmp.eq.s32.totalorder %v733, 1
    %v736 = vsel %vm735, %v731, 0.0
    %v737 = vsel %vm734, %v724, %v736
    %738 = vst [vmem:[#allocation11] sm:$0xff] %v737
    %v739 = vpack.c.bf16 %v718, %v718
    %740 = vst [vmem:[#allocation10] sm:$0xf] %v739
    // Predicated region
    $region42: #{tpu_custom_call.1} parent=1 // pred_check
      _
    $region43: #{tpu_custom_call.1} parent=1 // pred_check_branch
      %742 = sbr.rel (0) target = $region45
    $region44: #{tpu_custom_call.1} parent=1 // pred_region
      %744 = vsyncadd [#allocation4], 0
      %s746 = sshll.u32 [#allocation10], 4
      %s747 = int_to_ptr.vmem [resolvable:$true] %s746
      %s748 = sshll.u32 %s6, 4
      %s749 = int_to_ptr.hbm [resolvable:$true] %s748
      %751 = dma.vmem_to_hbm [thread:$0]  %s747, 64, %s749, [#allocation4]
    $region45: #{tpu_custom_call.1} parent=1 // pred_fallthru
      _
    // Predicated region
    $region46: #{tpu_custom_call.1} parent=1 // pred_check
      _
    $region47: #{tpu_custom_call.1} parent=1 // pred_check_branch
      %753 = sbr.rel (0) target = $region49
    $region48: #{tpu_custom_call.1} parent=1 // pred_region
      %755 = vsyncadd [#allocation12], 0
      %s757 = sshll.u32 [#allocation11], 4
      %s758 = int_to_ptr.vmem [resolvable:$true] %s757
      %s759 = sshll.u32 %s7, 4
      %s760 = int_to_ptr.hbm [resolvable:$true] %s759
      %762 = dma.vmem_to_hbm [thread:$0]  %s758, 128, %s760, [#allocation12]
    $region49: #{tpu_custom_call.1} parent=1 // pred_fallthru
      _
    // Predicated region
    $region50: #{tpu_custom_call.1} parent=1 // pred_check
      _
    $region51: #{tpu_custom_call.1} parent=1 // pred_check_branch
      %764 = sbr.rel (0) target = $region53
    $region52: #{tpu_custom_call.1} parent=1 // pred_region
      %766 = dma.done [#allocation4], 64
    $region53: #{tpu_custom_call.1} parent=1 // pred_fallthru
      _
    // Predicated region
    $region54: #{tpu_custom_call.1} parent=1 // pred_check
      _
    $region55: #{tpu_custom_call.1} parent=1 // pred_check_branch
      %768 = sbr.rel (0) target = $region57
    $region56: #{tpu_custom_call.1} parent=1 // pred_region
      %770 = dma.done [#allocation12], 128
    $region57: #{tpu_custom_call.1} parent=1 // pred_fallthru
      _
    %771 = vsyncpa [#allocation3], 1
    %772 = vsyncpa [#allocation6], 1
    %773 = vsyncpa [#allocation9], 1
    %774 = vsyncpa [#allocation4], 1
    %775 = vsyncpa [#allocation12], 1

</llo_original>
